<compile_context>
chip_gen: v6e
topology: v6e:2x2x1
jax: 0.10.0
libtpu: 0.0.40
codegen_flags: <defaults>
</compile_context>

<pallas_src>
import jax
import jax.numpy as jnp
from jax.experimental import pallas as pl
from jax.experimental.pallas import tpu as pltpu

TRUE_RATE = 0.2
FALSE_RATE = 0.03

# Scoped VMEM limit safe on every generation (v5e/v6e: 128 MiB physical,
# v7x: 64 MiB physical).  Pipeline buffers + accumulator budgeted to ~60%.
_SCOPED_VMEM_LIMIT = 32 * 1024 * 1024
_PIPELINE_BUDGET = int(0.6 * _SCOPED_VMEM_LIMIT)


def _round_up(x, m):
    return ((x + m - 1) // m) * m


def _pick_row_block(N, C):
    """Row-block size NB.  Legal values: NB == N, or NB % 8 == 0 and NB | N
    (keeps the (NB, 1) label BlockSpec sublane-aligned).  Prefer >= 2 row
    blocks (v7x megacore) and bound the f32 (NB, C, 128) accumulator to a
    fraction of the VMEM budget."""
    candidates = [d for d in range(8, N + 1, 8) if N % d == 0]
    if not candidates:
        return N
    acc_cap = _PIPELINE_BUDGET // 4
    fitting = [d for d in candidates if d * C * 128 * 4 <= acc_cap] or [candidates[0]]
    multi = [d for d in fitting if d < N]          # >= 2 row blocks if possible
    return max(multi) if multi else max(fitting)


def _pick_time_tile(T_pad, NB, C, itemsize):
    """Largest 128-multiple divisor of T_pad whose double-buffered (NB,C,tT)
    input block fits in the budget left over after the accumulator."""
    acc_bytes = NB * C * 128 * 4
    avail = max(_PIPELINE_BUDGET - acc_bytes, 0)
    best = 128
    t = 128
    while t <= T_pad:
        if T_pad % t == 0 and 2 * NB * C * t * itemsize <= avail:
            best = t
        t += 128
    return min(best, T_pad)


def _make_kernel(n_lane_chunks, inv_T, inv_count, true_rate, false_rate):
    def kernel(x_ref, lbl_ref, out_ref, acc_ref):
        """One grid step = (row block r, time tile t).

        x_ref:   (NB, C, tT)  spike tile (any dtype; widened to f32 here)
        lbl_ref: (NB, 1)      int32 labels for this row block
        out_ref: (1, 128)     lane-dense partial loss for this row block
        acc_ref: (NB, C, 128) f32 lane-preserving time-sum accumulator
        """
        t = pl.program_id(1)

        @pl.when(t == 0)
        def _init():
            acc_ref[...] = jnp.zeros_like(acc_ref)

        # Lane-preserving VPU accumulation: sum static 128-lane chunks of the
        # tile into registers first, then ONE read-modify-write of the
        # accumulator per grid step (keeps the vst slot off the critical path).
        partial = x_ref[:, :, 0:128].astype(jnp.float32)
        for k in range(1, n_lane_chunks):
            partial = partial + x_ref[:, :, k * 128:(k + 1) * 128].astype(jnp.float32)
        acc_ref[...] += partial

        @pl.when(t == pl.num_programs(1) - 1)
        def _finalize():
            # Single cross-lane reduce, once per row block (XLU off the hot loop).
            rate = jnp.sum(acc_ref[...], axis=-1) * inv_T            # (NB, C)
            lbl = lbl_ref[...]                                       # (NB, 1)
            class_ids = jax.lax.broadcasted_iota(jnp.int32, rate.shape, 1)
            # label == 0 is noise (no true class); label k>0 -> class k-1.
            # Labels > C give an all-false_rate row (matches jax.nn.one_hot;
            # PyTorch F.one_hot would raise).
            is_true = jnp.logical_and(class_ids == (lbl - 1), lbl > 0)
            target = jnp.where(is_true, true_rate, false_rate).astype(jnp.float32)
            err = rate - target
            loss = jnp.sum(err * err) * inv_count
            # Lane-dense unmasked (1, 128) store; wrapper reads lane 0.
            out_ref[...] = jnp.full(out_ref.shape, loss, dtype=jnp.float32)

    return kernel


def spiking_body_rate_loss(spikes, label, *, true_rate=TRUE_RATE,
                           false_rate=FALSE_RATE, reduction="sum"):
    """spikes: (N, ..., T) spike trains (int8/bf16/f32; values 0/1).
    label:  (N,) int labels; 0 == noise, k>0 means class k-1."""
    N = spikes.shape[0]
    T = spikes.shape[-1]
    x = spikes.reshape(N, -1, T)                     # collapse spatial -> (N, C, T)
    C = x.shape[1]
    lbl = label.reshape(N, 1).astype(jnp.int32)

    # Pad T up to a multiple of 128: zeros don't change the time-sum and keep
    # every tile lane-dense; inv_T below uses the TRUE T.
    T_pad = _round_up(T, 128)
    if T_pad != T:
        x = jnp.pad(x, ((0, 0), (0, 0), (0, T_pad - T)))

    itemsize = jnp.dtype(x.dtype).itemsize
    NB = _pick_row_block(N, C)
    R = N // NB
    tT = _pick_time_tile(T_pad, NB, C, itemsize)
    t_steps = T_pad // tT
    n_lane_chunks = tT // 128

    if reduction == "mean":
        inv_count = 1.0 / float(N * C)
    elif reduction == "sum":
        inv_count = 1.0
    else:
        raise ValueError(f"unsupported reduction {reduction!r}")

    kernel = _make_kernel(n_lane_chunks, 1.0 / float(T), inv_count,
                          float(true_rate), float(false_rate))

    # Small time tiles with many steps expose per-step overhead: deepen the
    # spike-input pipeline.
    x_spec_kwargs = {}
    if tT <= 128 and t_steps >= 4:
        x_spec_kwargs["pipeline_mode"] = pl.Buffered(3)
    x_spec = pl.BlockSpec((NB, C, tT), lambda r, t: (r, 0, t), **x_spec_kwargs)

    out = pl.pallas_call(
        kernel,
        out_shape=jax.ShapeDtypeStruct((1, R * 128), jnp.float32),
        grid_spec=pltpu.PrefetchScalarGridSpec(
            num_scalar_prefetch=0,
            grid=(R, t_steps),
            in_specs=[
                x_spec,
                pl.BlockSpec((NB, 1), lambda r, t: (r, 0)),
            ],
            out_specs=pl.BlockSpec((1, 128), lambda r, t: (0, r)),
            scratch_shapes=[pltpu.VMEM((NB, C, 128), jnp.float32)],
        ),
        compiler_params=pltpu.CompilerParams(
            # Row blocks are independent (megacore on v7x); the time axis
            # accumulates into the scratch / resident output.
            dimension_semantics=("parallel", "arbitrary"),
            vmem_limit_bytes=_SCOPED_VMEM_LIMIT),
    )(x, lbl)

    partials = out.reshape(R, 128)[:, 0]
    return jnp.sum(partials)


def reference_loss(spikes, label, true_rate=TRUE_RATE, false_rate=FALSE_RATE,
                   reduction="sum"):
    """Plain-JAX reference mirroring the PyTorch module (window=None path)."""
    N = spikes.shape[0]
    T = spikes.shape[-1]
    x = spikes.reshape(N, -1, T).astype(jnp.float32)
    C = x.shape[1]
    noise = label == 0
    lbl = jnp.where(noise, 0, label - 1)
    one_hot = jax.nn.one_hot(lbl, C, dtype=jnp.float32)
    one_hot = jnp.where(noise[:, None], 0.0, one_hot)
    rate = jnp.mean(x, axis=-1)
    target = true_rate * one_hot + false_rate * (1.0 - one_hot)
    sq = (rate - target) ** 2
    return jnp.sum(sq) if reduction == "sum" else jnp.mean(sq)


# TODO(synk): moving_window path (MovingWindow.rate with per-timestep labels)
# is not implemented; moving_window=None is the module default.

if __name__ == "__main__":
    key = jax.random.PRNGKey(0)
    k_spk, k_lbl = jax.random.split(key)

    # (N, C, spatial=1, T); spatial collapses into the class axis.
    N, C, S, T = 4, 16, 1, 32
    # Binary spike trains (~25% firing), stored as int8 (exact for 0/1) to
    # halve HBM traffic vs bf16; the kernel accumulates in f32.
    spikes = (jax.random.uniform(k_spk, (N, C, S, T)) < 0.25).astype(jnp.int8)
    # Labels in [0, C]; 0 means "noise" (no true class), k>0 means class k-1.
    label = jax.random.randint(k_lbl, (N,), 0, C * S + 1, dtype=jnp.int32)

    loss = spiking_body_rate_loss(spikes, label)
    jax.block_until_ready(loss)

    ref = reference_loss(spikes, label)
    assert jnp.allclose(loss, ref, rtol=1e-5, atol=1e-5), (loss, ref)

    # Also exercise the 'mean' reduction path.
    loss_m = spiking_body_rate_loss(spikes, label, reduction="mean")
    ref_m = reference_loss(spikes, label, reduction="mean")
    assert jnp.allclose(loss_m, ref_m, rtol=1e-5, atol=1e-6), (loss_m, ref_m)

    print("KERNEL_OK")
</pallas_src>

<mosaic_0001>
module attributes {stable_mosaic.version = 11 : i64} {
  func.func @kernel(%arg0: i32, %arg1: i32, %arg2: memref<4x16x128xi8, #tpu.memory_space<vmem>>, %arg3: memref<4x1xi32, #tpu.memory_space<vmem>>, %arg4: memref<1x128xf32, #tpu.memory_space<vmem>>, %arg5: memref<4x16x128xf32, #tpu.memory_space<vmem>>) attributes {dimension_semantics = [#tpu.dimension_semantics<parallel>, #tpu.dimension_semantics<arbitrary>], iteration_bounds = array<i64: 1, 1>, scalar_prefetch = 0 : i64, scratch_operands = 1 : i64, tpu.core_type = #tpu.core_type<tc>, window_params = [{transform_indices = @transform_0, window_bounds = array<i64: 4, 16, 128>}, {transform_indices = @transform_1, window_bounds = array<i64: 4, 1>}, {transform_indices = @transform_2, window_bounds = array<i64: 1, 128>}]} {
    %c0_i32 = arith.constant 0 : i32
    %0 = arith.cmpi eq, %arg1, %c0_i32 : i32
    %1 = arith.extui %0 : i1 to i32
    %c0_i32_0 = arith.constant 0 : i32
    %2 = arith.cmpi ne, %1, %c0_i32_0 : i32
    scf.if %2 {
      %cst = arith.constant 0.000000e+00 : f32
      %11 = vector.broadcast %cst : f32 to vector<4x16x128xf32>
      %c0_11 = arith.constant 0 : index
      %c0_12 = arith.constant 0 : index
      %c0_13 = arith.constant 0 : index
      %12 = vector.load %arg5[%c0_11, %c0_12, %c0_13] : memref<4x16x128xf32, #tpu.memory_space<vmem>>, vector<4x16x128xf32>
      tpu.vector_store %arg5[%c0_11, %c0_12, %c0_13], %11 {strides = array<i32>} : memref<4x16x128xf32, #tpu.memory_space<vmem>>, vector<4x16x128xf32>,
    } else {
    }
    %c0 = arith.constant 0 : index
    %c0_1 = arith.constant 0 : index
    %c0_2 = arith.constant 0 : index
    %3 = vector.load %arg2[%c0, %c0_1, %c0_2] : memref<4x16x128xi8, #tpu.memory_space<vmem>>, vector<4x16x128xi8>
    %4 = arith.sitofp %3 : vector<4x16x128xi8> to vector<4x16x128xf32>
    %c0_3 = arith.constant 0 : index
    %c0_4 = arith.constant 0 : index
    %c0_5 = arith.constant 0 : index
    %5 = vector.load %arg5[%c0_3, %c0_4, %c0_5] : memref<4x16x128xf32, #tpu.memory_space<vmem>>, vector<4x16x128xf32>
    %6 = arith.addf %5, %4 : vector<4x16x128xf32>
    %c0_6 = arith.constant 0 : index
    %c0_7 = arith.constant 0 : index
    %c0_8 = arith.constant 0 : index
    %7 = vector.load %arg5[%c0_6, %c0_7, %c0_8] : memref<4x16x128xf32, #tpu.memory_space<vmem>>, vector<4x16x128xf32>
    tpu.vector_store %arg5[%c0_6, %c0_7, %c0_8], %6 {strides = array<i32>} : memref<4x16x128xf32, #tpu.memory_space<vmem>>, vector<4x16x128xf32>,
    %c0_i32_9 = arith.constant 0 : i32
    %8 = arith.cmpi eq, %arg1, %c0_i32_9 : i32
    %9 = arith.extui %8 : i1 to i32
    %c0_i32_10 = arith.constant 0 : i32
    %10 = arith.cmpi ne, %9, %c0_i32_10 : i32
    scf.if %10 {
      %c0_11 = arith.constant 0 : index
      %c0_12 = arith.constant 0 : index
      %c0_13 = arith.constant 0 : index
      %11 = vector.load %arg5[%c0_11, %c0_12, %c0_13] : memref<4x16x128xf32, #tpu.memory_space<vmem>>, vector<4x16x128xf32>
      %cst = arith.constant dense<0.000000e+00> : vector<4x16xf32>
      %12 = vector.multi_reduction <add>, %11, %cst [2] : vector<4x16x128xf32> to vector<4x16xf32>
      %cst_14 = arith.constant 3.125000e-02 : f32
      %13 = vector.broadcast %cst_14 : f32 to vector<4x16xf32>
      %14 = arith.mulf %12, %13 : vector<4x16xf32>
      %c0_15 = arith.constant 0 : index
      %c0_16 = arith.constant 0 : index
      %15 = vector.load %arg3[%c0_15, %c0_16] : memref<4x1xi32, #tpu.memory_space<vmem>>, vector<4x1xi32>
      %16 = tpu.iota {dimensions = array<i32: 1>} : vector<4x16xi32>
      %c1_i32 = arith.constant 1 : i32
      %17 = vector.broadcast %c1_i32 : i32 to vector<4x1xi32>
      %18 = arith.subi %15, %17 : vector<4x1xi32>
      %19 = vector.broadcast %18 : vector<4x1xi32> to vector<4x16xi32>
      %20 = arith.cmpi eq, %16, %19 : vector<4x16xi32>
      %c0_i32_17 = arith.constant 0 : i32
      %21 = vector.broadcast %c0_i32_17 : i32 to vector<4x1xi32>
      %22 = arith.cmpi sgt, %15, %21 : vector<4x1xi32>
      %23 = vector.broadcast %22 : vector<4x1xi1> to vector<4x16xi1>
      %24 = arith.andi %20, %23 : vector<4x16xi1>
      %cst_18 = arith.constant 2.000000e-01 : f32
      %cst_19 = arith.constant 3.000000e-02 : f32
      %25 = vector.broadcast %cst_18 : f32 to vector<4x16xf32>
      %26 = vector.broadcast %cst_19 : f32 to vector<4x16xf32>
      %27 = arith.select %24, %25, %26 : vector<4x16xi1>, vector<4x16xf32>
      %28 = arith.subf %14, %27 : vector<4x16xf32>
      %29 = arith.mulf %28, %28 : vector<4x16xf32>
      %30 = vector.shape_cast %29 : vector<4x16xf32> to vector<1x4x16xf32>
      %cst_20 = arith.constant dense<0.000000e+00> : vector<1xf32>
      %31 = vector.multi_reduction <add>, %30, %cst_20 [1, 2] : vector<1x4x16xf32> to vector<1xf32>
      %32 = vector.shape_cast %31 : vector<1xf32> to vector<1x1x1xf32>
      %33 = vector.extract %32[0, 0, 0] : f32 from vector<1x1x1xf32>
      %cst_21 = arith.constant 1.000000e+00 : f32
      %34 = arith.mulf %33, %cst_21 : f32
      %35 = vector.broadcast %34 : f32 to vector<1x128xf32>
      %c0_22 = arith.constant 0 : index
      %c0_23 = arith.constant 0 : index
      %36 = vector.load %arg4[%c0_22, %c0_23] : memref<1x128xf32, #tpu.memory_space<vmem>>, vector<1x128xf32>
      tpu.vector_store %arg4[%c0_22, %c0_23], %35 {strides = array<i32>} : memref<1x128xf32, #tpu.memory_space<vmem>>, vector<1x128xf32>,
    } else {
    }
    return
  }
  func.func @transform_0(%arg0: i32, %arg1: i32) -> (i32, i32, i32) {
    %c0_i32 = arith.constant 0 : i32
    %c0_i32_0 = arith.constant 0 : i32
    return %arg0, %c0_i32, %arg1 : i32, i32, i32
  }
  func.func @transform_1(%arg0: i32, %arg1: i32) -> (i32, i32) {
    %c0_i32 = arith.constant 0 : i32
    %c0_i32_0 = arith.constant 0 : i32
    return %arg0, %c0_i32 : i32, i32
  }
  func.func @transform_2(%arg0: i32, %arg1: i32) -> (i32, i32) {
    %c0_i32 = arith.constant 0 : i32
    %c0_i32_0 = arith.constant 0 : i32
    return %c0_i32, %arg0 : i32, i32
  }
}

</mosaic_0001>

<llo_original>
// kernel: tpu_custom_call.1
$region0: #{tpu_custom_call.1}
  #allocation0 [shape = 'u32[]', space=smem, size = 0x4, offset = 0x4, fixed_abs, tag = 'smem constant byte address 0x4 - core index']
  #allocation1 [shape = 'u32[144,128]{1,0:T(1,128)}', space=vmem, size = 0x12000, scoped, tag = 'internal scratch']
  #allocation2 [shape = 'f32[4,16,128]{2,1,0:T(8,128)}', space=vmem, size = 0x8000, scoped, tag = 'scratch operand']
  %s0 = inlined_call_operand.hbm [shape: s8[4,16,128], index: 0, kind: input, shape index: {}]
  %s1 = inlined_call_operand.vmem [shape: s32[4,1], index: 1, kind: input, shape index: {}]
  %s2 = inlined_call_operand.hbm [shape: f32[1,128], index: 2, kind: output, shape index: {}]
  %s3 = sld [smem:[#allocation0]]
  $region30: #{tpu_custom_call.1} parent=0
    _
  %s5 = ssub.s32 1, %s3
  %s6 = scalar_select 0, %s5, %s3
  $region1: #{tpu_custom_call.1} parent=0
    #allocation3 [shape = 'u8[8192]{0}', space=vmem, size = 0x2000, scoped, tag = 'input window, operand 0, single buffered']
    #allocation4 [shape = 's32[1]{0}', space=sflag, size = 0x4, scoped, tag = 'scoped memory for tpu_custom_call.1']
    #allocation5 [shape = 's32[1]{0}', space=sflag, size = 0x4, scoped, tag = 'scoped memory for tpu_custom_call.1']
    #allocation6 [shape = 'u8[512]{0}', space=vmem, size = 0x400, scoped, tag = 'output window, operand 0, single buffered']
    %7 = vsyncpa [#allocation4], 0
    %8 = vsyncpa [#allocation5], 0
    // Predicated region
    $region2: #{tpu_custom_call.1} parent=1 // pred_check
      _
    $region3: #{tpu_custom_call.1} parent=1 // pred_check_branch
      %10 = sbr.rel (0) target = $region5
    $region4: #{tpu_custom_call.1} parent=1 // pred_region
      %s12 = ssub.s32 256, 256
      %13 = vsyncadd [#allocation4], %s12
      %s14 = sshll.u32 [#allocation3], 4
      %s15 = int_to_ptr.vmem [resolvable:$true] %s14
      %20 = dma.hbm_to_vmem [thread:$0]  %s0, 256, %s15, [#allocation4], 32, 32, 2
    $region5: #{tpu_custom_call.1} parent=1 // pred_fallthru
      _
    // Predicated region
    $region6: #{tpu_custom_call.1} parent=1 // pred_check
      _
    $region7: #{tpu_custom_call.1} parent=1 // pred_check_branch
      %22 = sbr.rel (0) target = $region9
    $region8: #{tpu_custom_call.1} parent=1 // pred_region
      _
    $region9: #{tpu_custom_call.1} parent=1 // pred_fallthru
      _
    // Predicated region
    $region10: #{tpu_custom_call.1} parent=1 // pred_check
      _
    $region11: #{tpu_custom_call.1} parent=1 // pred_check_branch
      %24 = sbr.rel (0) target = $region13
    $region12: #{tpu_custom_call.1} parent=1 // pred_region
      %25 = dma.done [#allocation4], 256
    $region13: #{tpu_custom_call.1} parent=1 // pred_fallthru
      _
    %p26 = scmp.eq.s32.totalorder 0, 0
    // Predicated region
    $region14: #{tpu_custom_call.1} parent=1 // pred_check
      %p27 = pneg %p26
    $region15: #{tpu_custom_call.1} parent=1 // pred_check_branch
      %29 = sbr.rel (%p27) target = $region17
    $region16: #{tpu_custom_call.1} parent=1 // pred_region
      %30 = vst [vmem:[#allocation2] sm:$0xff] 0.0
      %31 = vst [vmem:[#allocation2 + $0x8] sm:$0xff] 0.0
      %32 = vst [vmem:[#allocation2 + $0x10] sm:$0xff] 0.0
      %33 = vst [vmem:[#allocation2 + $0x18] sm:$0xff] 0.0
      %34 = vst [vmem:[#allocation2 + $0x20] sm:$0xff] 0.0
      %35 = vst [vmem:[#allocation2 + $0x28] sm:$0xff] 0.0
      %36 = vst [vmem:[#allocation2 + $0x30] sm:$0xff] 0.0
      %37 = vst [vmem:[#allocation2 + $0x38] sm:$0xff] 0.0
    $region17: #{tpu_custom_call.1} parent=1 // pred_fallthru
      _
    %v38 = vld [vmem:[#allocation3] sm:$0x3]
    %v39 = vld [vmem:[#allocation3 + $0x2] sm:$0x3]
    %v40 = vld [vmem:[#allocation3 + $0x4] sm:$0x3]
    %v41 = vld [vmem:[#allocation3 + $0x6] sm:$0x3]
    %v42 = vld [vmem:[#allocation3 + $0x8] sm:$0x3]
    %v43 = vld [vmem:[#allocation3 + $0xa] sm:$0x3]
    %v44 = vld [vmem:[#allocation3 + $0xc] sm:$0x3]
    %v45 = vld [vmem:[#allocation3 + $0xe] sm:$0x3]
    %v46 = vunpack.c.0.s8 %v38
    %v47 = vunpack.c.0.s8 %v39
    %v48 = vunpack.c.0.s8 %v40
    %v49 = vunpack.c.0.s8 %v41
    %v50 = vunpack.c.0.s8 %v42
    %v51 = vunpack.c.0.s8 %v43
    %v52 = vunpack.c.0.s8 %v44
    %v53 = vunpack.c.0.s8 %v45
    %v54 = vcvt.s32.f32 %v46
    %v55 = vcvt.s32.f32 %v47
    %v56 = vcvt.s32.f32 %v48
    %v57 = vcvt.s32.f32 %v49
    %v58 = vcvt.s32.f32 %v50
    %v59 = vcvt.s32.f32 %v51
    %v60 = vcvt.s32.f32 %v52
    %v61 = vcvt.s32.f32 %v53
    %v62 = vld [vmem:[#allocation2] sm:$0xff]
    %v63 = vld [vmem:[#allocation2 + $0x8] sm:$0xff]
    %v64 = vld [vmem:[#allocation2 + $0x10] sm:$0xff]
    %v65 = vld [vmem:[#allocation2 + $0x18] sm:$0xff]
    %v66 = vld [vmem:[#allocation2 + $0x20] sm:$0xff]
    %v67 = vld [vmem:[#allocation2 + $0x28] sm:$0xff]
    %v68 = vld [vmem:[#allocation2 + $0x30] sm:$0xff]
    %v69 = vld [vmem:[#allocation2 + $0x38] sm:$0xff]
    %v70 = vadd.f32 %v62, %v54
    %v71 = vadd.f32 %v63, %v55
    %v72 = vadd.f32 %v64, %v56
    %v73 = vadd.f32 %v65, %v57
    %v74 = vadd.f32 %v66, %v58
    %v75 = vadd.f32 %v67, %v59
    %v76 = vadd.f32 %v68, %v60
    %v77 = vadd.f32 %v69, %v61
    %78 = vst [vmem:[#allocation2] sm:$0xff] %v70
    %79 = vst [vmem:[#allocation2 + $0x8] sm:$0xff] %v71
    %80 = vst [vmem:[#allocation2 + $0x10] sm:$0xff] %v72
    %81 = vst [vmem:[#allocation2 + $0x18] sm:$0xff] %v73
    %82 = vst [vmem:[#allocation2 + $0x20] sm:$0xff] %v74
    %83 = vst [vmem:[#allocation2 + $0x28] sm:$0xff] %v75
    %84 = vst [vmem:[#allocation2 + $0x30] sm:$0xff] %v76
    %85 = vst [vmem:[#allocation2 + $0x38] sm:$0xff] %v77
    // Predicated region
    $region18: #{tpu_custom_call.1} parent=1 // pred_check
      %p86 = pneg %p26
    $region19: #{tpu_custom_call.1} parent=1 // pred_check_branch
      %88 = sbr.rel (%p86) target = $region21
    $region20: #{tpu_custom_call.1} parent=1 // pred_region
      %v89 = vld [vmem:[#allocation2] sm:$0xff]
      %v90 = vld [vmem:[#allocation2 + $0x8] sm:$0xff]
      %v91 = vld [vmem:[#allocation2 + $0x10] sm:$0xff]
      %v92 = vld [vmem:[#allocation2 + $0x18] sm:$0xff]
      %v93 = vld [vmem:[#allocation2 + $0x20] sm:$0xff]
      %v94 = vld [vmem:[#allocation2 + $0x28] sm:$0xff]
      %v95 = vld [vmem:[#allocation2 + $0x30] sm:$0xff]
      %v96 = vld [vmem:[#allocation2 + $0x38] sm:$0xff]
      %97 = vadd.xlane.f32.xlu0 %v89
      %v98 = vpop.xlane.xlu0 %97
      %99 = vadd.xlane.f32.xlu0 %v90
      %v100 = vpop.xlane.xlu0 %99
      %101 = vadd.xlane.f32.xlu0 %v91
      %v102 = vpop.xlane.xlu0 %101
      %103 = vadd.xlane.f32.xlu0 %v92
      %v104 = vpop.xlane.xlu0 %103
      %105 = vadd.xlane.f32.xlu0 %v93
      %v106 = vpop.xlane.xlu0 %105
      %107 = vadd.xlane.f32.xlu0 %v94
      %v108 = vpop.xlane.xlu0 %107
      %109 = vadd.xlane.f32.xlu0 %v95
      %v110 = vpop.xlane.xlu0 %109
      %111 = vadd.xlane.f32.xlu0 %v96
      %v112 = vpop.xlane.xlu0 %111
      %v113 = vmul.f32 %v98, 0.03125
      %v114 = vmul.f32 %v100, 0.03125
      %v115 = vmul.f32 %v102, 0.03125
      %v116 = vmul.f32 %v104, 0.03125
      %v117 = vmul.f32 %v106, 0.03125
      %v118 = vmul.f32 %v108, 0.03125
      %v119 = vmul.f32 %v110, 0.03125
      %v120 = vmul.f32 %v112, 0.03125
      %v121 = vld [vmem:[%s1] sm:$0xf]
      %v122 = vlaneseq
      %v123 = vand.u32 %v122, 127
      %v124 = vsub.s32 %v121, 1
      %125 = vset.pattern.permute.xlu0 0
      %126 = vperm.xlu0 %125, %v124
      %v127 = vpop.permute.xlu0 %126
      %vm128 = vcmp.eq.s32.totalorder %v123, %v127
      %vm129 = vcmp.gt.s32.totalorder %v121, 0
      %v130 = vsel %vm129, 1, 0
      %131 = vset.pattern.permute.xlu0 0
      %132 = vperm.xlu0 %131, %v130
      %v133 = vpop.permute.xlu0 %132
      %vm134 = vcmp.eq.s32.totalorder %v133, 1
      %vm135 = vmand %vm128, %vm134
      %v136 = vsel %vm135, 0.2, 0.03
      %v138 = vlaneseq
      %v139 = vshrl.u32 %v138, 7
      %v140 = vsub.s32 0, %v139
      %v141 = vrot.slane %v136, %v140
      %143 = vbcast.lane.b32.xlu0 %v141, 256
      %v144 = vpop.permute.xlu0 %143
      %s146 = sor.u32 256, 8
      %147 = vbcast.lane.b32.xlu0 %v141, %s146
      %v148 = vpop.permute.xlu0 %147
      %v149 = vlaneseq
      %v150 = vshrl.u32 %v149, 7
      %v151 = vsub.s32 1, %v150
      %v152 = vrot.slane %v136, %v151
      %154 = vbcast.lane.b32.xlu0 %v152, 256
      %v155 = vpop.permute.xlu0 %154
      %s157 = sor.u32 256, 8
      %158 = vbcast.lane.b32.xlu0 %v152, %s157
      %v159 = vpop.permute.xlu0 %158
      %v160 = vlaneseq
      %v161 = vshrl.u32 %v160, 7
      %v162 = vsub.s32 2, %v161
      %v163 = vrot.slane %v136, %v162
      %165 = vbcast.lane.b32.xlu0 %v163, 256
      %v166 = vpop.permute.xlu0 %165
      %s168 = sor.u32 256, 8
      %169 = vbcast.lane.b32.xlu0 %v163, %s168
      %v170 = vpop.permute.xlu0 %169
      %v171 = vlaneseq
      %v172 = vshrl.u32 %v171, 7
      %v173 = vsub.s32 3, %v172
      %v174 = vrot.slane %v136, %v173
      %176 = vbcast.lane.b32.xlu0 %v174, 256
      %v177 = vpop.permute.xlu0 %176
      %s179 = sor.u32 256, 8
      %180 = vbcast.lane.b32.xlu0 %v174, %s179
      %v181 = vpop.permute.xlu0 %180
      %v190 = vsub.f32 %v113, %v144
      %v191 = vsub.f32 %v114, %v148
      %v192 = vsub.f32 %v115, %v155
      %v193 = vsub.f32 %v116, %v159
      %v194 = vsub.f32 %v117, %v166
      %v195 = vsub.f32 %v118, %v170
      %v196 = vsub.f32 %v119, %v177
      %v197 = vsub.f32 %v120, %v181
      %v198 = vmul.f32 %v190, %v190
      %v199 = vmul.f32 %v191, %v191
      %v200 = vmul.f32 %v192, %v192
      %v201 = vmul.f32 %v193, %v193
      %v202 = vmul.f32 %v194, %v194
      %v203 = vmul.f32 %v195, %v195
      %v204 = vmul.f32 %v196, %v196
      %v205 = vmul.f32 %v197, %v197
      %214 = vset.pattern.permute.xlu0 0
      %215 = vperm.xlu0 %214, %v198
      %v216 = vpop.permute.xlu0 %215
      %217 = vset.pattern.permute.xlu0 0
      %218 = vperm.xlu0 %217, %v199
      %v219 = vpop.permute.xlu0 %218
      %220 = vset.pattern.permute.xlu0 0
      %221 = vperm.xlu0 %220, %v200
      %v222 = vpop.permute.xlu0 %221
      %223 = vset.pattern.permute.xlu0 0
      %224 = vperm.xlu0 %223, %v201
      %v225 = vpop.permute.xlu0 %224
      %226 = vset.pattern.permute.xlu0 0
      %227 = vperm.xlu0 %226, %v202
      %v228 = vpop.permute.xlu0 %227
      %229 = vset.pattern.permute.xlu0 0
      %230 = vperm.xlu0 %229, %v203
      %v231 = vpop.permute.xlu0 %230
      %232 = vset.pattern.permute.xlu0 0
      %233 = vperm.xlu0 %232, %v204
      %v234 = vpop.permute.xlu0 %233
      %235 = vset.pattern.permute.xlu0 0
      %236 = vperm.xlu0 %235, %v205
      %v237 = vpop.permute.xlu0 %236
      %v238 = vlaneseq
      %v239 = vshrl.u32 %v238, 7
      %v240 = vsub.s32 %v123, %v239
      %v241 = vrot.slane %v216, %v240
      %v242 = vadd.s32 %v123, 4294967288
      %v243 = vlaneseq
      %v244 = vshrl.u32 %v243, 7
      %v245 = vsub.s32 %v242, %v244
      %v246 = vrot.slane %v219, %v245
      %vm247 = vcmask 130112
      %v248 = vsel %vm247, %v246, %v241
      %v249 = vlaneseq
      %v250 = vshrl.u32 %v249, 7
      %v251 = vsub.s32 %v123, %v250
      %v252 = vrot.slane %v222, %v251
      %v253 = vlaneseq
      %v254 = vshrl.u32 %v253, 7
      %v255 = vsub.s32 %v242, %v254
      %v256 = vrot.slane %v225, %v255
      %v257 = vsel %vm247, %v256, %v252
      %v258 = vlaneseq
      %v259 = vshrl.u32 %v258, 7
      %v260 = vsub.s32 %v123, %v259
      %v261 = vrot.slane %v228, %v260
      %v262 = vlaneseq
      %v263 = vshrl.u32 %v262, 7
      %v264 = vsub.s32 %v242, %v263
      %v265 = vrot.slane %v231, %v264
      %v266 = vsel %vm247, %v265, %v261
      %v267 = vlaneseq
      %v268 = vshrl.u32 %v267, 7
      %v269 = vsub.s32 %v123, %v268
      %v270 = vrot.slane %v234, %v269
      %v271 = vlaneseq
      %v272 = vshrl.u32 %v271, 7
      %v273 = vsub.s32 %v242, %v272
      %v274 = vrot.slane %v237, %v273
      %v275 = vsel %vm247, %v274, %v270
      %vm276 = vcmask 1041409
      %v277 = vsel %vm276, %v257, %v248
      %vm278 = vcmask 1042434
      %v279 = vsel %vm278, %v266, %v277
      %vm280 = vcmask 1043459
      %v281 = vsel %vm280, %v275, %v279
      %vm283 = vcmask 125952
      %v284 = vsel %vm283, %v281, 0.0
      %285 = vadd.xlane.f32.xlu0 %v284
      %v286 = vpop.xlane.xlu0 %285
      %v287 = vrot.slane %v286, 4
      %v288 = vadd.f32 %v286, %v287
      %v289 = vrot.slane %v288, 2
      %v290 = vadd.f32 %v288, %v289
      %v291 = vrot.slane %v290, 1
      %v292 = vadd.f32 %v290, %v291
      %s293 = vtos %v292
      %v294 = vstv %s293
      %295 = vst [vmem:[#allocation6] sm:$0x1] %v294
    $region21: #{tpu_custom_call.1} parent=1 // pred_fallthru
      _
    // Predicated region
    $region22: #{tpu_custom_call.1} parent=1 // pred_check
      _
    $region23: #{tpu_custom_call.1} parent=1 // pred_check_branch
      %297 = sbr.rel (0) target = $region25
    $region24: #{tpu_custom_call.1} parent=1 // pred_region
      %s299 = ssub.s32 16, 16
      %300 = vsyncadd [#allocation5], %s299
      %s302 = sshll.u32 [#allocation6], 4
      %s303 = int_to_ptr.vmem [resolvable:$true] %s302
      %305 = dma.vmem_to_hbm [thread:$0]  %s303, 16, %s2, [#allocation5]
    $region25: #{tpu_custom_call.1} parent=1 // pred_fallthru
      _
    // Predicated region
    $region26: #{tpu_custom_call.1} parent=1 // pred_check
      _
    $region27: #{tpu_custom_call.1} parent=1 // pred_check_branch
      %307 = sbr.rel (0) target = $region29
    $region28: #{tpu_custom_call.1} parent=1 // pred_region
      %308 = dma.done [#allocation5], 16
    $region29: #{tpu_custom_call.1} parent=1 // pred_fallthru
      _
    %309 = vsyncpa [#allocation4], 1
    %310 = vsyncpa [#allocation5], 1

</llo_original>
